<compile_context>
chip_gen: v5e
topology: v5e:2x2
jax: 0.10.0
libtpu: 0.0.40
codegen_flags: <defaults>
</compile_context>

<pallas_src>
import functools

import jax
import jax.numpy as jnp
import numpy as np
from jax.experimental import pallas as pl
from jax.experimental.pallas import tpu as pltpu


def _fold(x, combine):
    """Elementwise-combine groups of 8 rows of `x` into a (min(8, R), W) result.

    Only uses sublane-tile-aligned static slices of a value (free views), so the
    fold is pure VPU work and the running accumulators stay one vreg-row tall.
    """
    r = x.shape[0]
    acc = x[:min(8, r), :]
    i = 8
    while i < r:
        n = min(8, r - i)
        blk = x[i:i + n, :]
        if n == 8:
            acc = combine(acc, blk)
        else:
            # sub-8 tail: only reachable for a single non-8-multiple full-H tile.
            acc = jnp.concatenate([combine(acc[:n, :], blk), acc[n:, :]], axis=0)
        i += 8
    return acc


def _tvl1_kernel(d_ref, g_ref, out_ref,
                 l1_acc, tvw_acc, tvh_acc, maxd, maxg, carry,
                 *, s_l1, s_tvw, s_tvh, tile_h, width, height, needs_mask):
    h = pl.program_id(1)
    nh = pl.num_programs(1)

    d = d_ref[0]          # (tile_h, W) block of this batch element
    g = g_ref[0]
    if d.dtype != jnp.float32:
        d = d.astype(jnp.float32)
    if g.dtype != jnp.float32:
        g = g.astype(jnp.float32)

    @pl.when(h == 0)
    def _init():
        l1_acc[...] = jnp.zeros_like(l1_acc)
        tvw_acc[...] = jnp.zeros_like(tvw_acc)
        tvh_acc[...] = jnp.zeros_like(tvh_acc)
        maxd[...] = jnp.full(maxd.shape, -jnp.inf, jnp.float32)
        maxg[...] = jnp.full(maxg.shape, -jnp.inf, jnp.float32)

    # Row-validity masks are only generated when H % tile_h != 0 (remainder tile);
    # the common divisible case pays nothing.
    if needs_mask:
        row = h * tile_h + jax.lax.broadcasted_iota(jnp.int32, (tile_h, width), 0)
        row_ok = row < height
        pair_ok = row < (height - 1)

    # ---- L1 term (elementwise, folded into an (8, W) accumulator) ----
    l1_term = jnp.abs(d - g)
    if needs_mask:
        l1_term = jnp.where(row_ok, l1_term, 0.0)
    l1_acc[...] += _fold(l1_term, jnp.add)

    # ---- TV along W: full-width shifted copy with the last column duplicated,
    #      so column W-1 contributes exactly 0 (no (W-1)-wide buffer, no mask). ----
    if width > 1:
        d_r = jnp.concatenate([d[:, 1:], d[:, width - 1:]], axis=1)
        tvw_term = jnp.abs(d_r - d)
        if needs_mask:
            tvw_term = jnp.where(row_ok, tvw_term, 0.0)
        tvw_acc[...] += _fold(tvw_term, jnp.add)

    # ---- TV along H within the tile: same edge-duplication trick on sublanes. ----
    if tile_h > 1:
        d_dn = jnp.concatenate([d[1:, :], d[tile_h - 1:, :]], axis=0)
        tvh_term = jnp.abs(d_dn - d)
        if needs_mask:
            tvh_term = jnp.where(pair_ok, tvh_term, 0.0)
        tvh_acc[...] += _fold(tvh_term, jnp.add)

    # ---- TV along H across the tile boundary (carried last row of previous tile) ----
    @pl.when(h > 0)
    def _boundary():
        tvh_acc[0:1, :] += jnp.abs(d[:1, :] - carry[...])

    # ---- per-batch running max (for the amax term) ----
    if needs_mask:
        d_mx = jnp.where(row_ok, d, -jnp.inf)
        g_mx = jnp.where(row_ok, g, -jnp.inf)
    else:
        d_mx, g_mx = d, g
    maxd[...] = jnp.maximum(maxd[...], _fold(d_mx, jnp.maximum))
    maxg[...] = jnp.maximum(maxg[...], _fold(g_mx, jnp.maximum))

    # carry this tile's last row for the next tile's TV-H boundary term
    carry[...] = d[tile_h - 1:, :]

    @pl.when(h == nh - 1)
    def _finalize():
        total = (jnp.sum(l1_acc[...]) * s_l1
                 + jnp.sum(tvw_acc[...]) * s_tvw
                 + jnp.sum(tvh_acc[...]) * s_tvh)
        mdiff = jnp.abs(jnp.max(maxd[...]) - jnp.max(maxg[...]))
        lane = jax.lax.broadcasted_iota(jnp.int32, out_ref.shape, 2)
        out_ref[...] = (jnp.where(lane == 0, total, 0.0)
                        + jnp.where(lane == 1, mdiff, 0.0))


def _vmem_capacity_bytes():
    try:
        cap = int(pltpu.get_tpu_info().vmem_capacity_bytes)
    except Exception:
        cap = 64 << 20          # conservative (v7x per-TC VMEM)
    return max(cap, 32 << 20)


def _pick_tile_h(H, W, itemsize, max_block_bytes):
    """Rows per block: a multiple of 8 (or == H), capped by VMEM and a 1024-row cap."""
    rows_cap = max(8, min(1024, max_block_bytes // max(1, W * itemsize)))
    rows_cap -= rows_cap % 8
    rows_cap = max(8, rows_cap)
    if H <= rows_cap:
        return H                                  # single full-H tile per batch element
    lo = max(8, ((rows_cap // 2) // 8) * 8)
    for t in range(rows_cap, lo - 1, -8):         # prefer a divisor (no remainder mask)
        if H % t == 0:
            return t
    return rows_cap                               # cdiv grid + in-kernel row masking


def tvl1_loss(decoded, GT, beta=1.0, gama=1.0, tile_h=None):
    assert decoded.shape == GT.shape and decoded.ndim == 3, "expect [B, H, W]"
    B, H, W = decoded.shape
    itemsize = decoded.dtype.itemsize

    cap = _vmem_capacity_bytes()
    if tile_h is None:
        # ~4 MiB per input block (2 inputs x 2 pipeline buffers + f32 temps stay
        # well within the per-generation VMEM capacity, 64 MiB on v7x).
        max_block_bytes = max(64 * 1024, min(4 << 20, cap // 16))
        tile_h = _pick_tile_h(H, W, itemsize, max_block_bytes)
    tile_h = min(tile_h, H)
    assert tile_h == H or tile_h % 8 == 0, "tile_h must be a multiple of 8 or == H"
    nh = -(-H // tile_h)
    needs_mask = (H % tile_h) != 0

    # NOTE: W==1 / H==1 make the matching TV term 0 here, whereas torch.mean over an
    # empty tensor would give NaN.
    s_l1 = 1.0 / float(B * H * W)
    s_tvw = float(beta) / float(max(1, B * H * (W - 1)))
    s_tvh = float(beta) / float(max(1, B * (H - 1) * W))

    acc_rows = min(8, tile_h)

    kernel = functools.partial(
        _tvl1_kernel, s_l1=s_l1, s_tvw=s_tvw, s_tvh=s_tvh,
        tile_h=tile_h, width=W, height=H, needs_mask=needs_mask)

    cost = pl.CostEstimate(
        flops=12 * B * H * W,                                   # elementwise only
        transcendentals=0,
        bytes_accessed=2 * B * H * W * itemsize + B * 8 * 128 * 4)

    vmem_limit = int(min(0.9 * cap, 100 << 20))

    partials = pl.pallas_call(
        kernel,
        out_shape=jax.ShapeDtypeStruct((B, 8, 128), jnp.float32),
        grid_spec=pltpu.PrefetchScalarGridSpec(
            num_scalar_prefetch=0,
            grid=(B, nh),                                       # reduction axis last
            in_specs=[
                pl.BlockSpec((1, tile_h, W), lambda b, h: (b, h, 0)),
                pl.BlockSpec((1, tile_h, W), lambda b, h: (b, h, 0)),
            ],
            out_specs=pl.BlockSpec((1, 8, 128), lambda b, h: (b, 0, 0)),
            scratch_shapes=[
                pltpu.VMEM((acc_rows, W), jnp.float32),         # L1 partial sums
                pltpu.VMEM((acc_rows, W), jnp.float32),         # TV-W partial sums
                pltpu.VMEM((acc_rows, W), jnp.float32),         # TV-H partial sums
                pltpu.VMEM((acc_rows, W), jnp.float32),         # running max(decoded)
                pltpu.VMEM((acc_rows, W), jnp.float32),         # running max(GT)
                pltpu.VMEM((1, W), jnp.float32),                # carried last row
            ]),
        compiler_params=pltpu.CompilerParams(
            dimension_semantics=("parallel", "arbitrary"),
            vmem_limit_bytes=vmem_limit),
        cost_estimate=cost,
    )(decoded, GT)

    # Lane 0: per-batch (1/B, beta)-scaled L1+TV partial sum; lane 1: per-batch
    # |amax(decoded) - amax(GT)|.  Tiny final combine in plain JAX.
    return jnp.sum(partials[:, 0, 0]) + float(gama) * jnp.mean(partials[:, 0, 1])


def _tvl1_ref(d, g, beta=1.0, gama=1.0):
    d = d.astype(jnp.float32)
    g = g.astype(jnp.float32)
    l1 = jnp.mean(jnp.abs(d - g))
    tv = (jnp.mean(jnp.abs(d[:, :, 1:] - d[:, :, :-1]))
          + jnp.mean(jnp.abs(d[:, 1:, :] - d[:, :-1, :])))
    mx = jnp.mean(jnp.abs(jnp.max(d, axis=(1, 2)) - jnp.max(g, axis=(1, 2))))
    return l1 + tv * beta + mx * gama


if __name__ == "__main__":
    key = jax.random.PRNGKey(0)
    k1, k2, k3, k4, k5, k6, k7, k8 = jax.random.split(key, 8)

    # Case 1: small image, auto tile (single H tile per batch element).
    d1 = jax.random.normal(k1, (2, 16, 16), dtype=jnp.float32)
    g1 = jax.random.normal(k2, (2, 16, 16), dtype=jnp.float32)
    out1 = tvl1_loss(d1, g1, beta=1.0, gama=1.0)
    jax.block_until_ready(out1)
    ref1 = _tvl1_ref(d1, g1, 1.0, 1.0)
    assert np.allclose(np.asarray(out1), np.asarray(ref1), rtol=1e-5, atol=1e-5), (
        f"case1 mismatch: kernel={float(out1)} ref={float(ref1)}")

    # Case 2: forced H tiling (16 over H=64): exercises the TV-H carry and the
    # running per-batch max across tiles.
    d2 = jax.random.normal(k3, (2, 64, 128), dtype=jnp.float32)
    g2 = jax.random.normal(k4, (2, 64, 128), dtype=jnp.float32)
    out2 = tvl1_loss(d2, g2, beta=0.5, gama=2.0, tile_h=16)
    jax.block_until_ready(out2)
    ref2 = _tvl1_ref(d2, g2, 0.5, 2.0)
    assert np.allclose(np.asarray(out2), np.asarray(ref2), rtol=1e-5, atol=1e-5), (
        f"case2 mismatch: kernel={float(out2)} ref={float(ref2)}")

    # Case 3: H=40 with tile_h=16 -> cdiv grid with a remainder tile and in-kernel
    # row masking.
    d3 = jax.random.normal(k5, (2, 40, 128), dtype=jnp.float32)
    g3 = jax.random.normal(k6, (2, 40, 128), dtype=jnp.float32)
    out3 = tvl1_loss(d3, g3, beta=1.0, gama=0.5, tile_h=16)
    jax.block_until_ready(out3)
    ref3 = _tvl1_ref(d3, g3, 1.0, 0.5)
    assert np.allclose(np.asarray(out3), np.asarray(ref3), rtol=1e-5, atol=1e-5), (
        f"case3 mismatch: kernel={float(out3)} ref={float(ref3)}")

    # Case 4: bf16 inputs (halves HBM traffic for this bandwidth-bound kernel);
    # all accumulation stays in f32.
    d4 = jax.random.normal(k7, (2, 32, 256), dtype=jnp.bfloat16)
    g4 = jax.random.normal(k8, (2, 32, 256), dtype=jnp.bfloat16)
    out4 = tvl1_loss(d4, g4, beta=1.0, gama=1.0, tile_h=8)
    jax.block_until_ready(out4)
    ref4 = _tvl1_ref(d4, g4, 1.0, 1.0)
    assert np.allclose(np.asarray(out4), np.asarray(ref4), rtol=1e-4, atol=1e-4), (
        f"case4 mismatch: kernel={float(out4)} ref={float(ref4)}")

    print("KERNEL_OK")
</pallas_src>

<mosaic_0001>
module attributes {stable_mosaic.version = 11 : i64} {
  func.func @_tvl1_kernel(%arg0: i32, %arg1: i32, %arg2: memref<1x16x16xf32, #tpu.memory_space<vmem>>, %arg3: memref<1x16x16xf32, #tpu.memory_space<vmem>>, %arg4: memref<1x8x128xf32, #tpu.memory_space<vmem>>, %arg5: memref<8x16xf32, #tpu.memory_space<vmem>>, %arg6: memref<8x16xf32, #tpu.memory_space<vmem>>, %arg7: memref<8x16xf32, #tpu.memory_space<vmem>>, %arg8: memref<8x16xf32, #tpu.memory_space<vmem>>, %arg9: memref<8x16xf32, #tpu.memory_space<vmem>>, %arg10: memref<1x16xf32, #tpu.memory_space<vmem>>) attributes {dimension_semantics = [#tpu.dimension_semantics<parallel>, #tpu.dimension_semantics<arbitrary>], iteration_bounds = array<i64: 2, 1>, scalar_prefetch = 0 : i64, scratch_operands = 6 : i64, tpu.core_type = #tpu.core_type<tc>, window_params = [{transform_indices = @transform_0, window_bounds = array<i64: 1, 16, 16>}, {transform_indices = @transform_1, window_bounds = array<i64: 1, 16, 16>}, {transform_indices = @transform_2, window_bounds = array<i64: 1, 8, 128>}]} {
    %c0 = arith.constant 0 : index
    %c0_0 = arith.constant 0 : index
    %c0_1 = arith.constant 0 : index
    %0 = vector.load %arg2[%c0, %c0_0, %c0_1] : memref<1x16x16xf32, #tpu.memory_space<vmem>>, vector<1x16x16xf32>
    %1 = vector.shape_cast %0 : vector<1x16x16xf32> to vector<16x16xf32>
    %c0_2 = arith.constant 0 : index
    %c0_3 = arith.constant 0 : index
    %c0_4 = arith.constant 0 : index
    %2 = vector.load %arg3[%c0_2, %c0_3, %c0_4] : memref<1x16x16xf32, #tpu.memory_space<vmem>>, vector<1x16x16xf32>
    %3 = vector.shape_cast %2 : vector<1x16x16xf32> to vector<16x16xf32>
    %c0_i32 = arith.constant 0 : i32
    %4 = arith.cmpi eq, %arg1, %c0_i32 : i32
    %5 = arith.extui %4 : i1 to i32
    %c0_i32_5 = arith.constant 0 : i32
    %6 = arith.cmpi ne, %5, %c0_i32_5 : i32
    scf.if %6 {
      %cst = arith.constant 0.000000e+00 : f32
      %57 = vector.broadcast %cst : f32 to vector<8x16xf32>
      %c0_32 = arith.constant 0 : index
      %c0_33 = arith.constant 0 : index
      %58 = vector.load %arg5[%c0_32, %c0_33] : memref<8x16xf32, #tpu.memory_space<vmem>>, vector<8x16xf32>
      tpu.vector_store %arg5[%c0_32, %c0_33], %57 {strides = array<i32>} : memref<8x16xf32, #tpu.memory_space<vmem>>, vector<8x16xf32>,
      %cst_34 = arith.constant 0.000000e+00 : f32
      %59 = vector.broadcast %cst_34 : f32 to vector<8x16xf32>
      %c0_35 = arith.constant 0 : index
      %c0_36 = arith.constant 0 : index
      %60 = vector.load %arg6[%c0_35, %c0_36] : memref<8x16xf32, #tpu.memory_space<vmem>>, vector<8x16xf32>
      tpu.vector_store %arg6[%c0_35, %c0_36], %59 {strides = array<i32>} : memref<8x16xf32, #tpu.memory_space<vmem>>, vector<8x16xf32>,
      %cst_37 = arith.constant 0.000000e+00 : f32
      %61 = vector.broadcast %cst_37 : f32 to vector<8x16xf32>
      %c0_38 = arith.constant 0 : index
      %c0_39 = arith.constant 0 : index
      %62 = vector.load %arg7[%c0_38, %c0_39] : memref<8x16xf32, #tpu.memory_space<vmem>>, vector<8x16xf32>
      tpu.vector_store %arg7[%c0_38, %c0_39], %61 {strides = array<i32>} : memref<8x16xf32, #tpu.memory_space<vmem>>, vector<8x16xf32>,
      %cst_40 = arith.constant 0xFF800000 : f32
      %63 = vector.broadcast %cst_40 : f32 to vector<8x16xf32>
      %c0_41 = arith.constant 0 : index
      %c0_42 = arith.constant 0 : index
      %64 = vector.load %arg8[%c0_41, %c0_42] : memref<8x16xf32, #tpu.memory_space<vmem>>, vector<8x16xf32>
      tpu.vector_store %arg8[%c0_41, %c0_42], %63 {strides = array<i32>} : memref<8x16xf32, #tpu.memory_space<vmem>>, vector<8x16xf32>,
      %cst_43 = arith.constant 0xFF800000 : f32
      %65 = vector.broadcast %cst_43 : f32 to vector<8x16xf32>
      %c0_44 = arith.constant 0 : index
      %c0_45 = arith.constant 0 : index
      %66 = vector.load %arg9[%c0_44, %c0_45] : memref<8x16xf32, #tpu.memory_space<vmem>>, vector<8x16xf32>
      tpu.vector_store %arg9[%c0_44, %c0_45], %65 {strides = array<i32>} : memref<8x16xf32, #tpu.memory_space<vmem>>, vector<8x16xf32>,
    } else {
    }
    %7 = arith.subf %1, %3 : vector<16x16xf32>
    %8 = math.absf %7 : vector<16x16xf32>
    %c0_6 = arith.constant 0 : index
    %c0_7 = arith.constant 0 : index
    %9 = vector.load %arg5[%c0_6, %c0_7] : memref<8x16xf32, #tpu.memory_space<vmem>>, vector<8x16xf32>
    %10 = vector.extract_strided_slice %8 {offsets = [0, 0], sizes = [8, 16], strides = [1, 1]} : vector<16x16xf32> to vector<8x16xf32>
    %11 = vector.extract_strided_slice %8 {offsets = [8, 0], sizes = [8, 16], strides = [1, 1]} : vector<16x16xf32> to vector<8x16xf32>
    %12 = arith.addf %10, %11 : vector<8x16xf32>
    %13 = arith.addf %9, %12 : vector<8x16xf32>
    %c0_8 = arith.constant 0 : index
    %c0_9 = arith.constant 0 : index
    %14 = vector.load %arg5[%c0_8, %c0_9] : memref<8x16xf32, #tpu.memory_space<vmem>>, vector<8x16xf32>
    tpu.vector_store %arg5[%c0_8, %c0_9], %13 {strides = array<i32>} : memref<8x16xf32, #tpu.memory_space<vmem>>, vector<8x16xf32>,
    %15 = vector.extract_strided_slice %1 {offsets = [0, 1], sizes = [16, 15], strides = [1, 1]} : vector<16x16xf32> to vector<16x15xf32>
    %16 = vector.extract_strided_slice %1 {offsets = [0, 15], sizes = [16, 1], strides = [1, 1]} : vector<16x16xf32> to vector<16x1xf32>
    %17 = tpu.concatenate %15, %16 in 1 : vector<16x15xf32>, vector<16x1xf32> -> vector<16x16xf32>
    %18 = arith.subf %17, %1 : vector<16x16xf32>
    %19 = math.absf %18 : vector<16x16xf32>
    %c0_10 = arith.constant 0 : index
    %c0_11 = arith.constant 0 : index
    %20 = vector.load %arg6[%c0_10, %c0_11] : memref<8x16xf32, #tpu.memory_space<vmem>>, vector<8x16xf32>
    %21 = vector.extract_strided_slice %19 {offsets = [0, 0], sizes = [8, 16], strides = [1, 1]} : vector<16x16xf32> to vector<8x16xf32>
    %22 = vector.extract_strided_slice %19 {offsets = [8, 0], sizes = [8, 16], strides = [1, 1]} : vector<16x16xf32> to vector<8x16xf32>
    %23 = arith.addf %21, %22 : vector<8x16xf32>
    %24 = arith.addf %20, %23 : vector<8x16xf32>
    %c0_12 = arith.constant 0 : index
    %c0_13 = arith.constant 0 : index
    %25 = vector.load %arg6[%c0_12, %c0_13] : memref<8x16xf32, #tpu.memory_space<vmem>>, vector<8x16xf32>
    tpu.vector_store %arg6[%c0_12, %c0_13], %24 {strides = array<i32>} : memref<8x16xf32, #tpu.memory_space<vmem>>, vector<8x16xf32>,
    %26 = vector.extract_strided_slice %1 {offsets = [1, 0], sizes = [15, 16], strides = [1, 1]} : vector<16x16xf32> to vector<15x16xf32>
    %27 = vector.extract_strided_slice %1 {offsets = [15, 0], sizes = [1, 16], strides = [1, 1]} : vector<16x16xf32> to vector<1x16xf32>
    %28 = tpu.concatenate %26, %27 in 0 : vector<15x16xf32>, vector<1x16xf32> -> vector<16x16xf32>
    %29 = arith.subf %28, %1 : vector<16x16xf32>
    %30 = math.absf %29 : vector<16x16xf32>
    %c0_14 = arith.constant 0 : index
    %c0_15 = arith.constant 0 : index
    %31 = vector.load %arg7[%c0_14, %c0_15] : memref<8x16xf32, #tpu.memory_space<vmem>>, vector<8x16xf32>
    %32 = vector.extract_strided_slice %30 {offsets = [0, 0], sizes = [8, 16], strides = [1, 1]} : vector<16x16xf32> to vector<8x16xf32>
    %33 = vector.extract_strided_slice %30 {offsets = [8, 0], sizes = [8, 16], strides = [1, 1]} : vector<16x16xf32> to vector<8x16xf32>
    %34 = arith.addf %32, %33 : vector<8x16xf32>
    %35 = arith.addf %31, %34 : vector<8x16xf32>
    %c0_16 = arith.constant 0 : index
    %c0_17 = arith.constant 0 : index
    %36 = vector.load %arg7[%c0_16, %c0_17] : memref<8x16xf32, #tpu.memory_space<vmem>>, vector<8x16xf32>
    tpu.vector_store %arg7[%c0_16, %c0_17], %35 {strides = array<i32>} : memref<8x16xf32, #tpu.memory_space<vmem>>, vector<8x16xf32>,
    %c0_i32_18 = arith.constant 0 : i32
    %37 = arith.cmpi sgt, %arg1, %c0_i32_18 : i32
    %38 = arith.extui %37 : i1 to i32
    %c0_i32_19 = arith.constant 0 : i32
    %39 = arith.cmpi ne, %38, %c0_i32_19 : i32
    scf.if %39 {
      %c0_32 = arith.constant 0 : index
      %c0_33 = arith.constant 0 : index
      %57 = vector.load %arg7[%c0_32, %c0_33] : memref<8x16xf32, #tpu.memory_space<vmem>>, vector<1x16xf32>
      %58 = vector.extract_strided_slice %1 {offsets = [0, 0], sizes = [1, 16], strides = [1, 1]} : vector<16x16xf32> to vector<1x16xf32>
      %c0_34 = arith.constant 0 : index
      %c0_35 = arith.constant 0 : index
      %59 = vector.load %arg10[%c0_34, %c0_35] : memref<1x16xf32, #tpu.memory_space<vmem>>, vector<1x16xf32>
      %60 = arith.subf %58, %59 : vector<1x16xf32>
      %61 = math.absf %60 : vector<1x16xf32>
      %62 = arith.addf %57, %61 : vector<1x16xf32>
      %c0_36 = arith.constant 0 : index
      %c0_37 = arith.constant 0 : index
      %63 = vector.load %arg7[%c0_36, %c0_37] : memref<8x16xf32, #tpu.memory_space<vmem>>, vector<1x16xf32>
      tpu.vector_store %arg7[%c0_36, %c0_37], %62 {strides = array<i32>} : memref<8x16xf32, #tpu.memory_space<vmem>>, vector<1x16xf32>,
    } else {
    }
    %c0_20 = arith.constant 0 : index
    %c0_21 = arith.constant 0 : index
    %40 = vector.load %arg8[%c0_20, %c0_21] : memref<8x16xf32, #tpu.memory_space<vmem>>, vector<8x16xf32>
    %41 = vector.extract_strided_slice %1 {offsets = [0, 0], sizes = [8, 16], strides = [1, 1]} : vector<16x16xf32> to vector<8x16xf32>
    %42 = vector.extract_strided_slice %1 {offsets = [8, 0], sizes = [8, 16], strides = [1, 1]} : vector<16x16xf32> to vector<8x16xf32>
    %43 = arith.maximumf %41, %42 : vector<8x16xf32>
    %44 = arith.maximumf %40, %43 : vector<8x16xf32>
    %c0_22 = arith.constant 0 : index
    %c0_23 = arith.constant 0 : index
    %45 = vector.load %arg8[%c0_22, %c0_23] : memref<8x16xf32, #tpu.memory_space<vmem>>, vector<8x16xf32>
    tpu.vector_store %arg8[%c0_22, %c0_23], %44 {strides = array<i32>} : memref<8x16xf32, #tpu.memory_space<vmem>>, vector<8x16xf32>,
    %c0_24 = arith.constant 0 : index
    %c0_25 = arith.constant 0 : index
    %46 = vector.load %arg9[%c0_24, %c0_25] : memref<8x16xf32, #tpu.memory_space<vmem>>, vector<8x16xf32>
    %47 = vector.extract_strided_slice %3 {offsets = [0, 0], sizes = [8, 16], strides = [1, 1]} : vector<16x16xf32> to vector<8x16xf32>
    %48 = vector.extract_strided_slice %3 {offsets = [8, 0], sizes = [8, 16], strides = [1, 1]} : vector<16x16xf32> to vector<8x16xf32>
    %49 = arith.maximumf %47, %48 : vector<8x16xf32>
    %50 = arith.maximumf %46, %49 : vector<8x16xf32>
    %c0_26 = arith.constant 0 : index
    %c0_27 = arith.constant 0 : index
    %51 = vector.load %arg9[%c0_26, %c0_27] : memref<8x16xf32, #tpu.memory_space<vmem>>, vector<8x16xf32>
    tpu.vector_store %arg9[%c0_26, %c0_27], %50 {strides = array<i32>} : memref<8x16xf32, #tpu.memory_space<vmem>>, vector<8x16xf32>,
    %52 = vector.extract_strided_slice %1 {offsets = [15, 0], sizes = [1, 16], strides = [1, 1]} : vector<16x16xf32> to vector<1x16xf32>
    %c0_28 = arith.constant 0 : index
    %c0_29 = arith.constant 0 : index
    %53 = vector.load %arg10[%c0_28, %c0_29] : memref<1x16xf32, #tpu.memory_space<vmem>>, vector<1x16xf32>
    tpu.vector_store %arg10[%c0_28, %c0_29], %52 {strides = array<i32>} : memref<1x16xf32, #tpu.memory_space<vmem>>, vector<1x16xf32>,
    %c0_i32_30 = arith.constant 0 : i32
    %54 = arith.cmpi eq, %arg1, %c0_i32_30 : i32
    %55 = arith.extui %54 : i1 to i32
    %c0_i32_31 = arith.constant 0 : i32
    %56 = arith.cmpi ne, %55, %c0_i32_31 : i32
    scf.if %56 {
      %c0_32 = arith.constant 0 : index
      %c0_33 = arith.constant 0 : index
      %57 = vector.load %arg5[%c0_32, %c0_33] : memref<8x16xf32, #tpu.memory_space<vmem>>, vector<8x16xf32>
      %58 = vector.shape_cast %57 : vector<8x16xf32> to vector<1x8x16xf32>
      %cst = arith.constant dense<0.000000e+00> : vector<1xf32>
      %59 = vector.multi_reduction <add>, %58, %cst [1, 2] : vector<1x8x16xf32> to vector<1xf32>
      %60 = vector.shape_cast %59 : vector<1xf32> to vector<1x1x1xf32>
      %61 = vector.extract %60[0, 0, 0] : f32 from vector<1x1x1xf32>
      %cst_34 = arith.constant 0.001953125 : f32
      %62 = arith.mulf %61, %cst_34 : f32
      %c0_35 = arith.constant 0 : index
      %c0_36 = arith.constant 0 : index
      %63 = vector.load %arg6[%c0_35, %c0_36] : memref<8x16xf32, #tpu.memory_space<vmem>>, vector<8x16xf32>
      %64 = vector.shape_cast %63 : vector<8x16xf32> to vector<1x8x16xf32>
      %cst_37 = arith.constant dense<0.000000e+00> : vector<1xf32>
      %65 = vector.multi_reduction <add>, %64, %cst_37 [1, 2] : vector<1x8x16xf32> to vector<1xf32>
      %66 = vector.shape_cast %65 : vector<1xf32> to vector<1x1x1xf32>
      %67 = vector.extract %66[0, 0, 0] : f32 from vector<1x1x1xf32>
      %cst_38 = arith.constant 0.00208333344 : f32
      %68 = arith.mulf %67, %cst_38 : f32
      %69 = arith.addf %62, %68 : f32
      %c0_39 = arith.constant 0 : index
      %c0_40 = arith.constant 0 : index
      %70 = vector.load %arg7[%c0_39, %c0_40] : memref<8x16xf32, #tpu.memory_space<vmem>>, vector<8x16xf32>
      %71 = vector.shape_cast %70 : vector<8x16xf32> to vector<1x8x16xf32>
      %cst_41 = arith.constant dense<0.000000e+00> : vector<1xf32>
      %72 = vector.multi_reduction <add>, %71, %cst_41 [1, 2] : vector<1x8x16xf32> to vector<1xf32>
      %73 = vector.shape_cast %72 : vector<1xf32> to vector<1x1x1xf32>
      %74 = vector.extract %73[0, 0, 0] : f32 from vector<1x1x1xf32>
      %cst_42 = arith.constant 0.00208333344 : f32
      %75 = arith.mulf %74, %cst_42 : f32
      %76 = arith.addf %69, %75 : f32
      %c0_43 = arith.constant 0 : index
      %c0_44 = arith.constant 0 : index
      %77 = vector.load %arg8[%c0_43, %c0_44] : memref<8x16xf32, #tpu.memory_space<vmem>>, vector<8x16xf32>
      %78 = vector.shape_cast %77 : vector<8x16xf32> to vector<1x8x16xf32>
      %cst_45 = arith.constant dense<0xFF800000> : vector<1xf32>
      %79 = vector.multi_reduction <maximumf>, %78, %cst_45 [1, 2] : vector<1x8x16xf32> to vector<1xf32>
      %80 = vector.shape_cast %79 : vector<1xf32> to vector<1x1x1xf32>
      %81 = vector.extract %80[0, 0, 0] : f32 from vector<1x1x1xf32>
      %c0_46 = arith.constant 0 : index
      %c0_47 = arith.constant 0 : index
      %82 = vector.load %arg9[%c0_46, %c0_47] : memref<8x16xf32, #tpu.memory_space<vmem>>, vector<8x16xf32>
      %83 = vector.shape_cast %82 : vector<8x16xf32> to vector<1x8x16xf32>
      %cst_48 = arith.constant dense<0xFF800000> : vector<1xf32>
      %84 = vector.multi_reduction <maximumf>, %83, %cst_48 [1, 2] : vector<1x8x16xf32> to vector<1xf32>
      %85 = vector.shape_cast %84 : vector<1xf32> to vector<1x1x1xf32>
      %86 = vector.extract %85[0, 0, 0] : f32 from vector<1x1x1xf32>
      %87 = arith.subf %81, %86 : f32
      %88 = math.absf %87 : f32
      %89 = tpu.iota {dimensions = array<i32: 2>} : vector<1x8x128xi32>
      %c0_i32_49 = arith.constant 0 : i32
      %90 = vector.broadcast %c0_i32_49 : i32 to vector<1x8x128xi32>
      %91 = arith.cmpi eq, %89, %90 : vector<1x8x128xi32>
      %cst_50 = arith.constant 0.000000e+00 : f32
      %92 = vector.broadcast %76 : f32 to vector<1x8x128xf32>
      %93 = vector.broadcast %cst_50 : f32 to vector<1x8x128xf32>
      %94 = arith.select %91, %92, %93 : vector<1x8x128xi1>, vector<1x8x128xf32>
      %c1_i32 = arith.constant 1 : i32
      %95 = vector.broadcast %c1_i32 : i32 to vector<1x8x128xi32>
      %96 = arith.cmpi eq, %89, %95 : vector<1x8x128xi32>
      %cst_51 = arith.constant 0.000000e+00 : f32
      %97 = vector.broadcast %88 : f32 to vector<1x8x128xf32>
      %98 = vector.broadcast %cst_51 : f32 to vector<1x8x128xf32>
      %99 = arith.select %96, %97, %98 : vector<1x8x128xi1>, vector<1x8x128xf32>
      %100 = arith.addf %94, %99 : vector<1x8x128xf32>
      %c0_52 = arith.constant 0 : index
      %c0_53 = arith.constant 0 : index
      %c0_54 = arith.constant 0 : index
      %101 = vector.load %arg4[%c0_52, %c0_53, %c0_54] : memref<1x8x128xf32, #tpu.memory_space<vmem>>, vector<1x8x128xf32>
      tpu.vector_store %arg4[%c0_52, %c0_53, %c0_54], %100 {strides = array<i32>} : memref<1x8x128xf32, #tpu.memory_space<vmem>>, vector<1x8x128xf32>,
    } else {
    }
    return
  }
  func.func @transform_0(%arg0: i32, %arg1: i32) -> (i32, i32, i32) {
    %c0_i32 = arith.constant 0 : i32
    %c0_i32_0 = arith.constant 0 : i32
    return %arg0, %arg1, %c0_i32 : i32, i32, i32
  }
  func.func @transform_1(%arg0: i32, %arg1: i32) -> (i32, i32, i32) {
    %c0_i32 = arith.constant 0 : i32
    %c0_i32_0 = arith.constant 0 : i32
    return %arg0, %arg1, %c0_i32 : i32, i32, i32
  }
  func.func @transform_2(%arg0: i32, %arg1: i32) -> (i32, i32, i32) {
    %c0_i32 = arith.constant 0 : i32
    %c0_i32_0 = arith.constant 0 : i32
    %c0_i32_1 = arith.constant 0 : i32
    return %arg0, %c0_i32, %c0_i32_0 : i32, i32, i32
  }
}

</mosaic_0001>

<llo_original>
// kernel: tpu_custom_call.1
$region0: #{tpu_custom_call.1}
  #allocation0 [shape = 'u32[]', space=smem, size = 0x4, offset = 0x4, fixed_abs, tag = 'smem constant byte address 0x4 - core index']
  #allocation1 [shape = 'u32[72,128]{1,0:T(1,128)}', space=vmem, size = 0x9000, scoped, tag = 'internal scratch']
  #allocation2 [shape = 'f32[8,16]{1,0:T(8,128)}', space=vmem, size = 0x1000, scoped, tag = 'scratch operand']
  #allocation3 [shape = 'f32[8,16]{1,0:T(8,128)}', space=vmem, size = 0x1000, scoped, tag = 'scratch operand']
  #allocation4 [shape = 'f32[8,16]{1,0:T(8,128)}', space=vmem, size = 0x1000, scoped, tag = 'scratch operand']
  #allocation5 [shape = 'f32[8,16]{1,0:T(8,128)}', space=vmem, size = 0x1000, scoped, tag = 'scratch operand']
  #allocation6 [shape = 'f32[8,16]{1,0:T(8,128)}', space=vmem, size = 0x1000, scoped, tag = 'scratch operand']
  #allocation7 [shape = 'f32[1,16]{1,0:T(1,128)}', space=vmem, size = 0x200, scoped, tag = 'scratch operand']
  %s0 = inlined_call_operand.hbm [shape: f32[2,16,16], index: 0, kind: input, shape index: {}]
  %s1 = inlined_call_operand.hbm [shape: f32[2,16,16], index: 1, kind: input, shape index: {}]
  %s2 = inlined_call_operand.hbm [shape: f32[2,8,128], index: 2, kind: output, shape index: {}]
  %s3 = sld [smem:[#allocation0]]
  $region61: #{tpu_custom_call.1} parent=0
    _
  %s5 = ssub.s32 1, %s3
  %s6 = scalar_select 0, %s5, %s3
  $region1: #{tpu_custom_call.1} parent=0
    #allocation8 [shape = 'u8[16384]{0}', space=vmem, size = 0x4000, scoped, tag = 'input window, operand 0']
    #allocation9 [shape = 's32[2]{0}', space=sflag, size = 0x8, scoped, tag = 'scoped memory for tpu_custom_call.1']
    #allocation10 [shape = 's32[2]{0}', space=sflag, size = 0x8, scoped, tag = 'scoped memory for tpu_custom_call.1']
    #allocation11 [shape = 'u8[16384]{0}', space=vmem, size = 0x4000, scoped, tag = 'input window, operand 1']
    #allocation12 [shape = 's32[2]{0}', space=sflag, size = 0x8, scoped, tag = 'scoped memory for tpu_custom_call.1']
    #allocation13 [shape = 'u8[8192]{0}', space=vmem, size = 0x2000, scoped, tag = 'output window, operand 0']
    %7 = vsyncpa [#allocation9], 0
    %s8 = scalar_lea.sflag [#allocation9], 1
    %9 = vsyncpa %s8, 0
    %10 = vsyncpa [#allocation12], 0
    %s11 = scalar_lea.sflag [#allocation12], 1
    %12 = vsyncpa %s11, 0
    %13 = vsyncpa [#allocation10], 0
    %s14 = scalar_lea.sflag [#allocation10], 1
    %15 = vsyncpa %s14, 0
    loop: start=0, step=1, limit=4
    $region2: #{tpu_custom_call.1} parent=1 // loop_pre_header
      _
    $region3: #{tpu_custom_call.1} parent=1 // loop_header
      %s17 = sphi 0, %s21
      %p18 = scmp.ge.s32.totalorder %s17, 4
      %s24 = sphi 0, %s36
      %s25 = sphi 0, %s32
      %s26 = sphi 0, %s24
      %s27 = sphi 0, %s25
      %s28 = sphi 0, %s26
      %s29 = sphi 0, %s27
      %s41 = sphi 0, %s43
      %s44 = sphi 0, %s41
      %s45 = sphi 0, %s44
      %s61 = sphi 0, %s45
      %s69 = sphi 0, %s71
      %s72 = sphi 0, %s69
      %s73 = sphi 0, %s72
      %s89 = sphi 0, %s73
      %s95 = sphi 0, %s97
      %s98 = sphi 0, %s95
      %s99 = sphi 0, %s98
      %s115 = sphi 0, %s99
    $region4: #{tpu_custom_call.1} parent=1 // loop_header_branch
      %20 = sbr.rel (%p18) target = $region8
    $region5: #{tpu_custom_call.1} parent=1 // loop_body
      %s22 = ssub.s32 %s17, 1
      %s23 = ssub.s32 %s17, 2
      %s30 = sadd.s32 1, %s25
      %p31 = scmp.ge.s32.totalorder %s30, 1
      %s32 = scalar_select %p31, 0, %s30
      %s33 = sadd.s32 1, %s24
      %s34 = scalar_select %p31, %s33, %s24
      %p35 = scmp.ge.s32.totalorder %s34, 2
      %s36 = scalar_select %p35, 0, %s34
      %s37 = ssub.s32 %s24, %s36
      %s38 = ssub.s32 %s25, %s32
      %s39 = sor.u32 %s37, %s38
      %p40 = scmp.eq.s32.totalorder %s39, 0
      %s42 = sadd.s32 %s41, 1
      %s43 = scalar_select %p40, %s41, %s42
      %p46 = pneg %p40
      %p47 = scmp.eq.s32.totalorder %s17, 1
      %p48 = por %p46, %p47
      %p49 = scmp.ne.s32.totalorder %s41, %s44
      %p50 = scmp.eq.s32.totalorder %s17, 0
      %p51 = por %p49, %p50
      %p52 = scmp.ne.s32.totalorder %s41, %s44
      %p53 = scmp.eq.s32.totalorder %s22, 1
      %p54 = por %p52, %p53
      %p55 = scmp.ne.s32.totalorder %s44, %s45
      %p56 = scmp.eq.s32.totalorder %s22, 0
      %p57 = por %p55, %p56
      %p58 = scmp.ne.s32.totalorder %s44, %s45
      %p59 = scmp.eq.s32.totalorder %s23, 1
      %p60 = por %p58, %p59
      %p62 = scmp.ne.s32.totalorder %s45, %s61
      %p63 = scmp.eq.s32.totalorder %s23, 0
      %p64 = por %p62, %p63
      %s65 = ssub.s32 %s24, %s36
      %s66 = ssub.s32 %s25, %s32
      %s67 = sor.u32 %s65, %s66
      %p68 = scmp.eq.s32.totalorder %s67, 0
      %s70 = sadd.s32 %s69, 1
      %s71 = scalar_select %p68, %s69, %s70
      %p74 = pneg %p68
      %p75 = scmp.eq.s32.totalorder %s17, 1
      %p76 = por %p74, %p75
      %p77 = scmp.ne.s32.totalorder %s69, %s72
      %p78 = scmp.eq.s32.totalorder %s17, 0
      %p79 = por %p77, %p78
      %p80 = scmp.ne.s32.totalorder %s69, %s72
      %p81 = scmp.eq.s32.totalorder %s22, 1
      %p82 = por %p80, %p81
      %p83 = scmp.ne.s32.totalorder %s72, %s73
      %p84 = scmp.eq.s32.totalorder %s22, 0
      %p85 = por %p83, %p84
      %p86 = scmp.ne.s32.totalorder %s72, %s73
      %p87 = scmp.eq.s32.totalorder %s23, 1
      %p88 = por %p86, %p87
      %p90 = scmp.ne.s32.totalorder %s73, %s89
      %p91 = scmp.eq.s32.totalorder %s23, 0
      %p92 = por %p90, %p91
      %s93 = ssub.s32 %s24, %s36
      %p94 = scmp.eq.s32.totalorder %s93, 0
      %s96 = sadd.s32 %s95, 1
      %s97 = scalar_select %p94, %s95, %s96
      %p100 = pneg %p94
      %p101 = scmp.eq.s32.totalorder %s17, 1
      %p102 = por %p100, %p101
      %p103 = scmp.ne.s32.totalorder %s95, %s98
      %p104 = scmp.eq.s32.totalorder %s17, 0
      %p105 = por %p103, %p104
      %p106 = scmp.ne.s32.totalorder %s95, %s98
      %p107 = scmp.eq.s32.totalorder %s22, 1
      %p108 = por %p106, %p107
      %p109 = scmp.ne.s32.totalorder %s98, %s99
      %p110 = scmp.eq.s32.totalorder %s22, 0
      %p111 = por %p109, %p110
      %p112 = scmp.ne.s32.totalorder %s98, %s99
      %p113 = scmp.eq.s32.totalorder %s23, 1
      %p114 = por %p112, %p113
      %p116 = scmp.ne.s32.totalorder %s99, %s115
      %p117 = scmp.eq.s32.totalorder %s23, 0
      %p118 = por %p116, %p117
      %p119 = scmp.le.s32.totalorder 1, %s17
      %p120 = scmp.lt.s32.totalorder %s17, 3
      %p121 = pnand %p119, %p120
      %p122 = pneg %p121
      // Predicated region
      $region9: #{tpu_custom_call.1} parent=5 // pred_check
        _
      $region10: #{tpu_custom_call.1} parent=5 // pred_check_branch
        %124 = sbr.rel (%p121) target = $region12
      $region11: #{tpu_custom_call.1} parent=5 // pred_region
        %s125 = ssub.s32 %s17, 1
      $region12: #{tpu_custom_call.1} parent=5 // pred_fallthru
        _
      %p126 = scmp.lt.s32.totalorder %s17, 2
      // Predicated region
      $region13: #{tpu_custom_call.1} parent=5 // pred_check
        %p127 = pneg %p126
      $region14: #{tpu_custom_call.1} parent=5 // pred_check_branch
        %129 = sbr.rel (%p127) target = $region16
      $region15: #{tpu_custom_call.1} parent=5 // pred_region
        // Predicated region
        $region17: #{tpu_custom_call.1} parent=15 // pred_check
          %p130 = pneg %p51
        $region18: #{tpu_custom_call.1} parent=15 // pred_check_branch
          %132 = sbr.rel (%p130) target = $region20
        $region19: #{tpu_custom_call.1} parent=15 // pred_region
          %s133 = sand.u32 %s41, 1
          %s134 = scalar_lea.sflag [#allocation9], %s133
          %s135 = sand.u32 %s41, 1
          %s136 = smul.addr %s135, 16
          %s137 = scalar_lea.vmem [#allocation8], %s136
          %s138 = smul.u32 2, %s25
          %140 = vsyncadd %s134, 0
          %s141 = smul.addr %s24, 2
          %s142 = sadd.s32 %s138, %s141
          %s143 = smul.addr %s142, 8
          %s144 = scalar_lea.hbm %s0, %s143
          %s145 = sshll.u32 %s144, 4
          %s146 = int_to_ptr.hbm [resolvable:$true] %s145
          %s147 = sshll.u32 %s137, 4
          %s148 = int_to_ptr.vmem [resolvable:$true] %s147
          %153 = dma.hbm_to_vmem [thread:$0]  %s146, 256, %s148, %s134, 128, 128, 8
        $region20: #{tpu_custom_call.1} parent=15 // pred_fallthru
          _
        // Predicated region
        $region21: #{tpu_custom_call.1} parent=15 // pred_check
          %p154 = pneg %p79
        $region22: #{tpu_custom_call.1} parent=15 // pred_check_branch
          %156 = sbr.rel (%p154) target = $region24
        $region23: #{tpu_custom_call.1} parent=15 // pred_region
          %s157 = sand.u32 %s69, 1
          %s158 = scalar_lea.sflag [#allocation12], %s157
          %s159 = sand.u32 %s69, 1
          %s160 = smul.addr %s159, 16
          %s161 = scalar_lea.vmem [#allocation11], %s160
          %s162 = smul.u32 2, %s25
          %164 = vsyncadd %s158, 0
          %s165 = smul.addr %s24, 2
          %s166 = sadd.s32 %s162, %s165
          %s167 = smul.addr %s166, 8
          %s168 = scalar_lea.hbm %s1, %s167
          %s169 = sshll.u32 %s168, 4
          %s170 = int_to_ptr.hbm [resolvable:$true] %s169
          %s171 = sshll.u32 %s161, 4
          %s172 = int_to_ptr.vmem [resolvable:$true] %s171
          %177 = dma.hbm_to_vmem [thread:$0]  %s170, 256, %s172, %s158, 128, 128, 8
        $region24: #{tpu_custom_call.1} parent=15 // pred_fallthru
          _
      $region16: #{tpu_custom_call.1} parent=5 // pred_fallthru
        _
      %p178 = scmp.le.s32.totalorder 1, %s17
      %p179 = scmp.lt.s32.totalorder %s17, 3
      %p180 = pnand %p178, %p179
      %p181 = pneg %p180
      // Predicated region
      $region25: #{tpu_custom_call.1} parent=5 // pred_check
        _
      $region26: #{tpu_custom_call.1} parent=5 // pred_check_branch
        %183 = sbr.rel (%p180) target = $region28
      $region27: #{tpu_custom_call.1} parent=5 // pred_region
        %s184 = ssub.s32 %s17, 1
        %s185 = sand.u32 %s44, 1
        %s186 = scalar_lea.sflag [#allocation9], %s185
        %s187 = sand.u32 %s44, 1
        %s188 = smul.addr %s187, 16
        %s189 = scalar_lea.vmem [#allocation8], %s188
        // Predicated region
        $region29: #{tpu_custom_call.1} parent=27 // pred_check
          %p190 = pneg %p57
        $region30: #{tpu_custom_call.1} parent=27 // pred_check_branch
          %192 = sbr.rel (%p190) target = $region32
        $region31: #{tpu_custom_call.1} parent=27 // pred_region
          %194 = dma.done %s186, 256
        $region32: #{tpu_custom_call.1} parent=27 // pred_fallthru
          _
        %s195 = sand.u32 %s72, 1
        %s196 = scalar_lea.sflag [#allocation12], %s195
        %s197 = sand.u32 %s72, 1
        %s198 = smul.addr %s197, 16
        %s199 = scalar_lea.vmem [#allocation11], %s198
        // Predicated region
        $region33: #{tpu_custom_call.1} parent=27 // pred_check
          %p200 = pneg %p85
        $region34: #{tpu_custom_call.1} parent=27 // pred_check_branch
          %202 = sbr.rel (%p200) target = $region36
        $region35: #{tpu_custom_call.1} parent=27 // pred_region
          %204 = dma.done %s196, 256
        $region36: #{tpu_custom_call.1} parent=27 // pred_fallthru
          _
        %s205 = sand.u32 %s44, 1
        %s206 = scalar_lea.sflag [#allocation9], %s205
        %s207 = sand.u32 %s44, 1
        %s208 = smul.addr %s207, 16
        %s209 = scalar_lea.vmem [#allocation8], %s208
        %p210 = pneg %p57
        %p211 = pneg %p54
        %s212 = sand.u32 %s72, 1
        %s213 = scalar_lea.sflag [#allocation12], %s212
        %s214 = sand.u32 %s72, 1
        %s215 = smul.addr %s214, 16
        %s216 = scalar_lea.vmem [#allocation11], %s215
        %p217 = pneg %p85
        %p218 = pneg %p82
        %p219 = pneg %p111
        %p220 = pneg %p108
        %s221 = sand.u32 %s98, 1
        %s222 = scalar_lea.sflag [#allocation10], %s221
        %s223 = sand.u32 %s98, 1
        %s224 = smul.addr %s223, 8
        %s225 = scalar_lea.vmem [#allocation13], %s224
        %s226 = smul.u32 2, %s27
        %s227 = smul.u32 2, %s27
        %v228 = vld [vmem:[%s189] sm:$0xff]
        %v229 = vld [vmem:[%s189 + $0x8] sm:$0xff]
        %v230 = vld [vmem:[%s199] sm:$0xff]
        %v231 = vld [vmem:[%s199 + $0x8] sm:$0xff]
        %p232 = scmp.eq.s32.totalorder %s27, 0
        // Predicated region
        $region37: #{tpu_custom_call.1} parent=27 // pred_check
          %p233 = pneg %p232
        $region38: #{tpu_custom_call.1} parent=27 // pred_check_branch
          %235 = sbr.rel (%p233) target = $region40
        $region39: #{tpu_custom_call.1} parent=27 // pred_region
          %vm236 = vcmask 130048
          %237 = vst.msk [vmem:[#allocation2] sm:$0xff] %vm236, 0.0
          %238 = vst.msk [vmem:[#allocation3] sm:$0xff] %vm236, 0.0
          %239 = vst.msk [vmem:[#allocation4] sm:$0xff] %vm236, 0.0
          %240 = vst.msk [vmem:[#allocation5] sm:$0xff] %vm236, -inf
          %241 = vst.msk [vmem:[#allocation6] sm:$0xff] %vm236, -inf
        $region40: #{tpu_custom_call.1} parent=27 // pred_fallthru
          _
        %v242 = vsub.f32 %v228, %v230
        %v243 = vsub.f32 %v229, %v231
        %v244 = vand.u32 2147483647, %v242
        %v245 = vand.u32 2147483647, %v243
        %v246 = vld [vmem:[#allocation2] sm:$0xff]
        %v247 = vadd.f32 %v244, %v245
        %v248 = vadd.f32 %v246, %v247
        %vm249 = vcmask 130048
        %250 = vst.msk [vmem:[#allocation2] sm:$0xff] %vm249, %v248
        %253 = vrot.lane.b32.xlu0 %v228, 127
        %v254 = vpop.permute.xlu0 %253
        %255 = vrot.lane.b32.xlu0 %v229, 127
        %v256 = vpop.permute.xlu0 %255
        %vm259 = vcmask 121856
        %v260 = vsel %vm259, %v254, %v228
        %v261 = vsel %vm259, %v256, %v229
        %v262 = vsub.f32 %v260, %v228
        %v263 = vsub.f32 %v261, %v229
        %v264 = vand.u32 2147483647, %v262
        %v265 = vand.u32 2147483647, %v263
        %v266 = vld [vmem:[#allocation3] sm:$0xff]
        %v267 = vadd.f32 %v264, %v265
        %v268 = vadd.f32 %v266, %v267
        %269 = vst.msk [vmem:[#allocation3] sm:$0xff] %vm249, %v268
        %vm270 = vcmask 1046528
        %v271 = vrot.slane %v228, 1
        %v272 = vrot.slane %v229, 1
        %v273 = vsel %vm270, %v271, %v272
        %v276 = vsel %vm270, %v272, %v229
        %v277 = vsub.f32 %v273, %v228
        %v278 = vsub.f32 %v276, %v229
        %v279 = vand.u32 2147483647, %v277
        %v280 = vand.u32 2147483647, %v278
        %v281 = vld [vmem:[#allocation4] sm:$0xff]
        %v282 = vadd.f32 %v279, %v280
        %v283 = vadd.f32 %v281, %v282
        %284 = vst.msk [vmem:[#allocation4] sm:$0xff] %vm249, %v283
        %p285 = scmp.gt.s32.totalorder %s27, 0
        // Predicated region
        $region41: #{tpu_custom_call.1} parent=27 // pred_check
          %p286 = pneg %p285
        $region42: #{tpu_custom_call.1} parent=27 // pred_check_branch
          %288 = sbr.rel (%p286) target = $region44
        $region43: #{tpu_custom_call.1} parent=27 // pred_region
          %v289 = vld [vmem:[#allocation4] sm:$0x1]
          %v290 = vld [vmem:[#allocation7] sm:$0x1]
          %v291 = vsub.f32 %v228, %v290
          %v292 = vand.u32 2147483647, %v291
          %v293 = vadd.f32 %v289, %v292
          %vm294 = vcmask 122880
          %295 = vst.msk [vmem:[#allocation4] sm:$0x1] %vm294, %v293
        $region44: #{tpu_custom_call.1} parent=27 // pred_fallthru
          _
        %v296 = vld [vmem:[#allocation5] sm:$0xff]
        %v297 = vmax.f32 %v228, %v229
        %v298 = vmax.f32 %v296, %v297
        %299 = vst.msk [vmem:[#allocation5] sm:$0xff] %vm249, %v298
        %v300 = vld [vmem:[#allocation6] sm:$0xff]
        %v301 = vmax.f32 %v230, %v231
        %v302 = vmax.f32 %v300, %v301
        %303 = vst.msk [vmem:[#allocation6] sm:$0xff] %vm249, %v302
        %vm304 = vcmask 130055
        %305 = vst.msk [vmem:[#allocation7 - $0x7] sm:$0x80] %vm304, %v229
        // Predicated region
        $region45: #{tpu_custom_call.1} parent=27 // pred_check
          %p306 = pneg %p232
        $region46: #{tpu_custom_call.1} parent=27 // pred_check_branch
          %308 = sbr.rel (%p306) target = $region48
        $region47: #{tpu_custom_call.1} parent=27 // pred_region
          %v309 = vld [vmem:[#allocation2] sm:$0xff]
          %v310 = vsel %vm249, %v309, 0.0
          %311 = vadd.xlane.f32.xlu0 %v310
          %v312 = vpop.xlane.xlu0 %311
          %v313 = vrot.slane %v312, 4
          %v314 = vadd.f32 %v312, %v313
          %v315 = vrot.slane %v314, 2
          %v316 = vadd.f32 %v314, %v315
          %v317 = vrot.slane %v316, 1
          %v318 = vadd.f32 %v316, %v317
          %s319 = vtos %v318
          %s320 = smul.f32 %s319, 0.001953125
          %v321 = vld [vmem:[#allocation3] sm:$0xff]
          %v322 = vsel %vm249, %v321, 0.0
          %323 = vadd.xlane.f32.xlu0 %v322
          %v324 = vpop.xlane.xlu0 %323
          %v325 = vrot.slane %v324, 4
          %v326 = vadd.f32 %v324, %v325
          %v327 = vrot.slane %v326, 2
          %v328 = vadd.f32 %v326, %v327
          %v329 = vrot.slane %v328, 1
          %v330 = vadd.f32 %v328, %v329
          %s331 = vtos %v330
          %s332 = smul.f32 %s331, 0.0020833334
          %s333 = sadd.f32 %s320, %s332
          %v334 = vld [vmem:[#allocation4] sm:$0xff]
          %v335 = vsel %vm249, %v334, 0.0
          %336 = vadd.xlane.f32.xlu0 %v335
          %v337 = vpop.xlane.xlu0 %336
          %v338 = vrot.slane %v337, 4
          %v339 = vadd.f32 %v337, %v338
          %v340 = vrot.slane %v339, 2
          %v341 = vadd.f32 %v339, %v340
          %v342 = vrot.slane %v341, 1
          %v343 = vadd.f32 %v341, %v342
          %s344 = vtos %v343
          %s345 = smul.f32 %s344, 0.0020833334
          %s346 = sadd.f32 %s333, %s345
          %v347 = vld [vmem:[#allocation5] sm:$0xff]
          %v348 = vsel %vm249, %v347, -inf
          %349 = vmax.xlane.f32.xlu0 %v348
          %v350 = vpop.xlane.xlu0 %349
          %v351 = vrot.slane %v350, 4
          %v352 = vmax.f32 %v350, %v351
          %v353 = vrot.slane %v352, 2
          %v354 = vmax.f32 %v352, %v353
          %v355 = vrot.slane %v354, 1
          %v356 = vmax.f32 %v354, %v355
          %s357 = vtos %v356
          %v358 = vld [vmem:[#allocation6] sm:$0xff]
          %v359 = vsel %vm249, %v358, -inf
          %360 = vmax.xlane.f32.xlu0 %v359
          %v361 = vpop.xlane.xlu0 %360
          %v362 = vrot.slane %v361, 4
          %v363 = vmax.f32 %v361, %v362
          %v364 = vrot.slane %v363, 2
          %v365 = vmax.f32 %v363, %v364
          %v366 = vrot.slane %v365, 1
          %v367 = vmax.f32 %v365, %v366
          %s368 = vtos %v367
          %s369 = ssub.f32 %s357, %s368
          %s370 = sand.u32 2147483647, %s369
          %v371 = vlaneseq
          %v372 = vand.u32 %v371, 127
          %vm373 = vcmp.eq.s32.totalorder %v372, 0
          %v374 = vstv %s346
          %v375 = vsel %vm373, %v374, 0.0
          %vm376 = vcmp.eq.s32.totalorder %v372, 1
          %v377 = vstv %s370
          %v378 = vsel %vm376, %v377, 0.0
          %v379 = vadd.f32 %v375, %v378
          %380 = vst [vmem:[%s225] sm:$0xff] %v379
        $region48: #{tpu_custom_call.1} parent=27 // pred_fallthru
          _
        %s381 = sand.u32 %s98, 1
        %s382 = scalar_lea.sflag [#allocation10], %s381
        %s383 = sand.u32 %s98, 1
        %s384 = smul.addr %s383, 8
        %s385 = scalar_lea.vmem [#allocation13], %s384
        // Predicated region
        $region49: #{tpu_custom_call.1} parent=27 // pred_check
          %p386 = pneg %p108
        $region50: #{tpu_custom_call.1} parent=27 // pred_check_branch
          %388 = sbr.rel (%p386) target = $region52
        $region51: #{tpu_custom_call.1} parent=27 // pred_region
          %390 = vsyncadd %s382, 0
          %s391 = smul.addr %s26, 8
          %s392 = scalar_lea.hbm %s2, %s391
          %s394 = sshll.u32 %s385, 4
          %s395 = int_to_ptr.vmem [resolvable:$true] %s394
          %s396 = sshll.u32 %s392, 4
          %s397 = int_to_ptr.hbm [resolvable:$true] %s396
          %399 = dma.vmem_to_hbm [thread:$0]  %s395, 128, %s397, %s382
        $region52: #{tpu_custom_call.1} parent=27 // pred_fallthru
          _
      $region28: #{tpu_custom_call.1} parent=5 // pred_fallthru
        _
      %p400 = scmp.le.s32.totalorder 2, %s17
      // Predicated region
      $region53: #{tpu_custom_call.1} parent=5 // pred_check
        %p401 = pneg %p400
      $region54: #{tpu_custom_call.1} parent=5 // pred_check_branch
        %403 = sbr.rel (%p401) target = $region56
      $region55: #{tpu_custom_call.1} parent=5 // pred_region
        %s404 = ssub.s32 %s17, 2
        // Predicated region
        $region57: #{tpu_custom_call.1} parent=55 // pred_check
          %p405 = pneg %p114
        $region58: #{tpu_custom_call.1} parent=55 // pred_check_branch
          %407 = sbr.rel (%p405) target = $region60
        $region59: #{tpu_custom_call.1} parent=55 // pred_region
          %s408 = sand.u32 %s99, 1
          %s409 = scalar_lea.sflag [#allocation10], %s408
          %s410 = sand.u32 %s99, 1
          %s411 = smul.addr %s410, 8
          %s412 = scalar_lea.vmem [#allocation13], %s411
          %414 = dma.done %s409, 128
        $region60: #{tpu_custom_call.1} parent=55 // pred_fallthru
          _
      $region56: #{tpu_custom_call.1} parent=5 // pred_fallthru
        _
    $region6: #{tpu_custom_call.1} parent=1 // loop_footer
      %s21 = sadd.s32 1, %s17
    $region7: #{tpu_custom_call.1} parent=1 // loop_footer_branch
      %16 = sbr.rel target = $region3
    $region8: #{tpu_custom_call.1} parent=1 // loop_exit
      _
    %415 = vsyncpa [#allocation9], 1
    %s416 = scalar_lea.sflag [#allocation9], 1
    %417 = vsyncpa %s416, 1
    %418 = vsyncpa [#allocation12], 1
    %s419 = scalar_lea.sflag [#allocation12], 1
    %420 = vsyncpa %s419, 1
    %421 = vsyncpa [#allocation10], 1
    %s422 = scalar_lea.sflag [#allocation10], 1
    %423 = vsyncpa %s422, 1

</llo_original>
